<compile_context>
chip_gen: v6e
topology: v6e:2x2x1
jax: 0.10.0
libtpu: 0.0.40
codegen_flags: <defaults>
</compile_context>

<pallas_src>
import functools
import math

import jax
import jax.numpy as jnp
from jax.experimental import pallas as pl
from jax.experimental.pallas import tpu as pltpu

_HALF_LOG_2PI = 0.5 * math.log(2.0 * math.pi)


def _iwae_kernel(mu_y, sg_y, ty, mu_q, sg_q, mu_p, sg_p,
                 loss_ref, mlp_ref, mkld_ref, acc_ref, *,
                 n_task, z_dim, n_samples, pad_elems):
    k = pl.program_id(0)

    @pl.when(k == 0)
    def _init():
        acc_ref[...] = jnp.zeros_like(acc_ref)

    # ---- hot path: Normal(log_prob) of target_y, per-lane accumulate ------
    mu = mu_y[...].astype(jnp.float32)
    sg = sg_y[...].astype(jnp.float32)
    t = ty[...].astype(jnp.float32)
    r = pl.reciprocal(sg, approx=False)          # exact; keeps 1e-4 tolerance
    d = (t - mu) * r
    acc_ref[...] += -0.5 * (d * d) + jnp.log(r) - _HALF_LOG_2PI

    @pl.when(k == pl.num_programs(0) - 1)
    def _finalize():
        # single cross-lane (XLU) reduce over the accumulated partials
        sum_logp = jnp.sum(acc_ref[...], axis=-1, keepdims=True)        # [S,1]
        # undo the exact -0.5*log(2*pi) contribution of each padded element
        sum_logp = sum_logp + pad_elems * _HALF_LOG_2PI
        # -1 * log_prob.sum(-1).sum(-1).mean(-1)  ==  -(1/T) * sum over (T,N,D)
        sum_log_prob = -sum_logp / n_task                                # [S,1]

        # ---- KL( posterior || prior ), diagonal Normals (resident z blocks)
        muq = mu_q[...].astype(jnp.float32)
        sgq = sg_q[...].astype(jnp.float32)
        mup = mu_p[...].astype(jnp.float32)
        sgp = sg_p[...].astype(jnp.float32)
        rq = pl.reciprocal(sgq, approx=False)
        rp = pl.reciprocal(sgp, approx=False)
        log_ratio = jnp.log(sgp * rq)            # fused log(sg_p / sg_q)
        mu_diff = muq - mup
        kl_elem = (log_ratio
                   + (sgq * sgq + mu_diff * mu_diff) * (0.5 * rp * rp) - 0.5)
        # kl.sum(dim=1).mean(dim=-1)  ==  (1/Z) * sum over (T,Z)
        kld_v = jnp.sum(kl_elem, axis=-1, keepdims=True) / z_dim         # [S,1]

        # ---- logsumexp over the num_samples axis + reported means ----------
        w = sum_log_prob + kld_v                                          # [S,1]
        m = jnp.max(w)
        loss_ref[0] = m + jnp.log(jnp.sum(jnp.exp(w - m)))
        mlp_ref[0] = jnp.sum(sum_log_prob) / n_samples
        mkld_ref[0] = jnp.sum(kld_v) / n_samples


def iwae_loss(mu_y, sigma_y, target_y, mu_q, sigma_q, mu_p, sigma_p,
              *, max_tile_k=2048):
    """Returns (loss, mean_log_prob, mean_kld) as scalars."""
    S, T, N, D = mu_y.shape
    _, _, Z = mu_q.shape
    K = T * N * D
    TZ = T * Z
    f32 = jnp.float32

    # flatten trailing dims (free view); keep original dtype (upcast in-kernel)
    mu_y_f = mu_y.reshape(S, K)
    sg_y_f = sigma_y.reshape(S, K)
    ty_f = target_y.reshape(S, K)
    mu_q_f = mu_q.reshape(S, TZ)
    sg_q_f = sigma_q.reshape(S, TZ)
    mu_p_f = mu_p.reshape(S, TZ)
    sg_p_f = sigma_p.reshape(S, TZ)

    # lane-aligned reduction tile (multiple of 128); capped so double-buffered
    # y tiles + resident z arrays + accumulator stay inside v7x's 64 MiB VMEM
    tile_k = min(int(max_tile_k), pl.cdiv(K, 128) * 128)
    tile_k = max(128, (tile_k // 128) * 128)
    k_pad = pl.cdiv(K, tile_k) * tile_k
    pad = k_pad - K
    if pad:
        mu_y_f = jnp.pad(mu_y_f, ((0, 0), (0, pad)))
        ty_f = jnp.pad(ty_f, ((0, 0), (0, pad)))
        sg_y_f = jnp.pad(sg_y_f, ((0, 0), (0, pad)), constant_values=1.0)
    num_k = k_pad // tile_k

    kernel = functools.partial(
        _iwae_kernel, n_task=float(T), z_dim=float(Z),
        n_samples=float(S), pad_elems=float(pad))

    y_spec = pl.BlockSpec((S, tile_k), lambda k: (0, k))
    z_spec = pl.BlockSpec((S, TZ), lambda k: (0, 0))   # resident across grid
    smem_spec = pl.BlockSpec(memory_space=pltpu.MemorySpace.SMEM)

    y_itemsize = jnp.dtype(mu_y.dtype).itemsize
    z_itemsize = jnp.dtype(mu_q.dtype).itemsize
    vmem_needed = (3 * 2 * S * tile_k * y_itemsize    # y tiles, double-buffered
                   + 4 * 2 * S * TZ * z_itemsize      # resident z arrays
                   + S * tile_k * 4)                  # f32 accumulator scratch
    # raise v5e's 16 MiB scoped default; keep headroom on v7x (64 MiB physical)
    vmem_limit = int(min(48 * 1024 * 1024,
                         max(32 * 1024 * 1024, 2 * vmem_needed)))

    bytes_in = ((mu_y_f.size + sg_y_f.size + ty_f.size) * y_itemsize
                + 4 * S * TZ * z_itemsize)
    cost = pl.CostEstimate(flops=9 * S * K + 12 * S * TZ,
                           transcendentals=2 * S * K + 3 * S * TZ,
                           bytes_accessed=int(bytes_in) + 3 * 4)

    loss, mlp, mkld = pl.pallas_call(
        kernel,
        out_shape=(jax.ShapeDtypeStruct((1,), f32),
                   jax.ShapeDtypeStruct((1,), f32),
                   jax.ShapeDtypeStruct((1,), f32)),
        grid_spec=pltpu.PrefetchScalarGridSpec(
            num_scalar_prefetch=0,
            grid=(num_k,),
            in_specs=[y_spec, y_spec, y_spec,
                      z_spec, z_spec, z_spec, z_spec],
            out_specs=(smem_spec, smem_spec, smem_spec),
            scratch_shapes=[pltpu.VMEM((S, tile_k), jnp.float32)]),
        compiler_params=pltpu.CompilerParams(
            dimension_semantics=("arbitrary",),
            vmem_limit_bytes=vmem_limit),
        cost_estimate=cost,
    )(mu_y_f, sg_y_f, ty_f, mu_q_f, sg_q_f, mu_p_f, sg_p_f)

    # TODO(synk): for very large S on v7x, add a leading "parallel" grid axis
    # over sample chunks (partial sums finished in the wrapper) so the second
    # TensorCore is used; at small S*T*N*D the extra grid steps are overhead.
    # NOTE: the PyTorch module returns mean_kld=None when the z dists are None;
    # that branch is static Python glue, so here the dists are always supplied.
    return loss[0], mlp[0], mkld[0]


def _reference(mu_y, sg_y, ty, mu_q, sg_q, mu_p, sg_p):
    logp = -0.5 * ((ty - mu_y) / sg_y) ** 2 - jnp.log(sg_y) - _HALF_LOG_2PI
    sum_log_prob = -logp.sum(-1).sum(-1).mean(-1)
    kl = (jnp.log(sg_p / sg_q)
          + (sg_q ** 2 + (mu_q - mu_p) ** 2) / (2.0 * sg_p ** 2) - 0.5)
    kld = kl.sum(1).mean(-1)
    loss = jax.scipy.special.logsumexp(sum_log_prob + kld)
    return loss, sum_log_prob.mean(), kld.mean()


if __name__ == "__main__":
    # small shapes: num_samples=8, task=4, num_points=24, y_dim=7, z_dim=8
    # (y_dim=7 makes T*N*D=672 not a multiple of the tile -> exercises the
    #  padded, multi-step gridded reduction path: 3 tiles of 256 lanes)
    S, T, N, D, Z = 8, 4, 24, 7, 8
    key = jax.random.PRNGKey(0)
    ks = jax.random.split(key, 7)

    mu_y = jax.random.normal(ks[0], (S, T, N, D), jnp.float32)
    sigma_y = jax.nn.softplus(jax.random.normal(ks[1], (S, T, N, D), jnp.float32)) + 0.1
    target_y = jax.random.normal(ks[2], (S, T, N, D), jnp.float32)
    mu_q = jax.random.normal(ks[3], (S, T, Z), jnp.float32)
    sigma_q = jax.nn.softplus(jax.random.normal(ks[4], (S, T, Z), jnp.float32)) + 0.1
    mu_p = jax.random.normal(ks[5], (S, T, Z), jnp.float32)
    sigma_p = jax.nn.softplus(jax.random.normal(ks[6], (S, T, Z), jnp.float32)) + 0.1

    loss, mean_log_prob, mean_kld = iwae_loss(
        mu_y, sigma_y, target_y, mu_q, sigma_q, mu_p, sigma_p,
        max_tile_k=256)
    jax.block_until_ready((loss, mean_log_prob, mean_kld))

    ref_loss, ref_mlp, ref_mkld = _reference(
        mu_y, sigma_y, target_y, mu_q, sigma_q, mu_p, sigma_p)

    assert jnp.allclose(loss, ref_loss, rtol=1e-4, atol=1e-4), (loss, ref_loss)
    assert jnp.allclose(mean_log_prob, ref_mlp, rtol=1e-4, atol=1e-4), (mean_log_prob, ref_mlp)
    assert jnp.allclose(mean_kld, ref_mkld, rtol=1e-4, atol=1e-4), (mean_kld, ref_mkld)

    print("KERNEL_OK")
</pallas_src>

<mosaic_0001>
module attributes {stable_mosaic.version = 11 : i64} {
  func.func @_iwae_kernel(%arg0: i32, %arg1: memref<8x256xf32, #tpu.memory_space<vmem>>, %arg2: memref<8x256xf32, #tpu.memory_space<vmem>>, %arg3: memref<8x256xf32, #tpu.memory_space<vmem>>, %arg4: memref<8x32xf32, #tpu.memory_space<vmem>>, %arg5: memref<8x32xf32, #tpu.memory_space<vmem>>, %arg6: memref<8x32xf32, #tpu.memory_space<vmem>>, %arg7: memref<8x32xf32, #tpu.memory_space<vmem>>, %arg8: memref<1xf32, #tpu.memory_space<smem>>, %arg9: memref<1xf32, #tpu.memory_space<smem>>, %arg10: memref<1xf32, #tpu.memory_space<smem>>, %arg11: memref<8x256xf32, #tpu.memory_space<vmem>>) attributes {dimension_semantics = [#tpu.dimension_semantics<arbitrary>], iteration_bounds = array<i64: 3>, scalar_prefetch = 0 : i64, scratch_operands = 1 : i64, tpu.core_type = #tpu.core_type<tc>, window_params = [{transform_indices = @transform_0, window_bounds = array<i64: 8, 256>}, {transform_indices = @transform_1, window_bounds = array<i64: 8, 256>}, {transform_indices = @transform_2, window_bounds = array<i64: 8, 256>}, {pipeline_mode = #tpu.pipeline_mode<synchronous>, transform_indices = @transform_3, window_bounds = array<i64: 8, 32>}, {pipeline_mode = #tpu.pipeline_mode<synchronous>, transform_indices = @transform_4, window_bounds = array<i64: 8, 32>}, {pipeline_mode = #tpu.pipeline_mode<synchronous>, transform_indices = @transform_5, window_bounds = array<i64: 8, 32>}, {pipeline_mode = #tpu.pipeline_mode<synchronous>, transform_indices = @transform_6, window_bounds = array<i64: 8, 32>}, {transform_indices = @transform_7, window_bounds = array<i64: 1>}, {transform_indices = @transform_8, window_bounds = array<i64: 1>}, {transform_indices = @transform_9, window_bounds = array<i64: 1>}]} {
    %c0_i32 = arith.constant 0 : i32
    %0 = arith.cmpi eq, %arg0, %c0_i32 : i32
    %1 = arith.extui %0 : i1 to i32
    %c0_i32_0 = arith.constant 0 : i32
    %2 = arith.cmpi ne, %1, %c0_i32_0 : i32
    scf.if %2 {
      %cst_12 = arith.constant 0.000000e+00 : f32
      %22 = vector.broadcast %cst_12 : f32 to vector<8x256xf32>
      %c0_13 = arith.constant 0 : index
      %c0_14 = arith.constant 0 : index
      %23 = vector.load %arg11[%c0_13, %c0_14] : memref<8x256xf32, #tpu.memory_space<vmem>>, vector<8x256xf32>
      tpu.vector_store %arg11[%c0_13, %c0_14], %22 {strides = array<i32>} : memref<8x256xf32, #tpu.memory_space<vmem>>, vector<8x256xf32>,
    } else {
    }
    %c0 = arith.constant 0 : index
    %c0_1 = arith.constant 0 : index
    %3 = vector.load %arg1[%c0, %c0_1] : memref<8x256xf32, #tpu.memory_space<vmem>>, vector<8x256xf32>
    %c0_2 = arith.constant 0 : index
    %c0_3 = arith.constant 0 : index
    %4 = vector.load %arg2[%c0_2, %c0_3] : memref<8x256xf32, #tpu.memory_space<vmem>>, vector<8x256xf32>
    %c0_4 = arith.constant 0 : index
    %c0_5 = arith.constant 0 : index
    %5 = vector.load %arg3[%c0_4, %c0_5] : memref<8x256xf32, #tpu.memory_space<vmem>>, vector<8x256xf32>
    %6 = tpu.reciprocal %4 : vector<8x256xf32> -> vector<8x256xf32>
    %7 = arith.subf %5, %3 : vector<8x256xf32>
    %8 = arith.mulf %7, %6 : vector<8x256xf32>
    %c0_6 = arith.constant 0 : index
    %c0_7 = arith.constant 0 : index
    %9 = vector.load %arg11[%c0_6, %c0_7] : memref<8x256xf32, #tpu.memory_space<vmem>>, vector<8x256xf32>
    %10 = arith.mulf %8, %8 : vector<8x256xf32>
    %cst = arith.constant -5.000000e-01 : f32
    %11 = vector.broadcast %cst : f32 to vector<8x256xf32>
    %12 = arith.mulf %11, %10 : vector<8x256xf32>
    %13 = math.log %6 : vector<8x256xf32>
    %14 = arith.addf %12, %13 : vector<8x256xf32>
    %cst_8 = arith.constant 0.918938517 : f32
    %15 = vector.broadcast %cst_8 : f32 to vector<8x256xf32>
    %16 = arith.subf %14, %15 : vector<8x256xf32>
    %17 = arith.addf %9, %16 : vector<8x256xf32>
    %c0_9 = arith.constant 0 : index
    %c0_10 = arith.constant 0 : index
    %18 = vector.load %arg11[%c0_9, %c0_10] : memref<8x256xf32, #tpu.memory_space<vmem>>, vector<8x256xf32>
    tpu.vector_store %arg11[%c0_9, %c0_10], %17 {strides = array<i32>} : memref<8x256xf32, #tpu.memory_space<vmem>>, vector<8x256xf32>,
    %c2_i32 = arith.constant 2 : i32
    %19 = arith.cmpi eq, %arg0, %c2_i32 : i32
    %20 = arith.extui %19 : i1 to i32
    %c0_i32_11 = arith.constant 0 : i32
    %21 = arith.cmpi ne, %20, %c0_i32_11 : i32
    scf.if %21 {
      %c0_12 = arith.constant 0 : index
      %c0_13 = arith.constant 0 : index
      %22 = vector.load %arg11[%c0_12, %c0_13] : memref<8x256xf32, #tpu.memory_space<vmem>>, vector<8x256xf32>
      %cst_14 = arith.constant dense<0.000000e+00> : vector<8xf32>
      %23 = vector.multi_reduction <add>, %22, %cst_14 [1] : vector<8x256xf32> to vector<8xf32>
      %24 = vector.shape_cast %23 : vector<8xf32> to vector<8x1xf32>
      %cst_15 = arith.constant 8.821810e+01 : f32
      %25 = vector.broadcast %cst_15 : f32 to vector<8x1xf32>
      %26 = arith.addf %24, %25 : vector<8x1xf32>
      %cst_16 = arith.constant 0.000000e+00 : f32
      %27 = vector.broadcast %cst_16 : f32 to vector<8x1xf32>
      %28 = arith.subf %27, %26 : vector<8x1xf32>
      %cst_17 = arith.constant 4.000000e+00 : f32
      %29 = vector.broadcast %cst_17 : f32 to vector<8x1xf32>
      %30 = arith.divf %28, %29 : vector<8x1xf32>
      %c0_18 = arith.constant 0 : index
      %c0_19 = arith.constant 0 : index
      %31 = vector.load %arg4[%c0_18, %c0_19] : memref<8x32xf32, #tpu.memory_space<vmem>>, vector<8x32xf32>
      %c0_20 = arith.constant 0 : index
      %c0_21 = arith.constant 0 : index
      %32 = vector.load %arg5[%c0_20, %c0_21] : memref<8x32xf32, #tpu.memory_space<vmem>>, vector<8x32xf32>
      %c0_22 = arith.constant 0 : index
      %c0_23 = arith.constant 0 : index
      %33 = vector.load %arg6[%c0_22, %c0_23] : memref<8x32xf32, #tpu.memory_space<vmem>>, vector<8x32xf32>
      %c0_24 = arith.constant 0 : index
      %c0_25 = arith.constant 0 : index
      %34 = vector.load %arg7[%c0_24, %c0_25] : memref<8x32xf32, #tpu.memory_space<vmem>>, vector<8x32xf32>
      %35 = tpu.reciprocal %32 : vector<8x32xf32> -> vector<8x32xf32>
      %36 = tpu.reciprocal %34 : vector<8x32xf32> -> vector<8x32xf32>
      %37 = arith.mulf %34, %35 : vector<8x32xf32>
      %38 = math.log %37 : vector<8x32xf32>
      %39 = arith.subf %31, %33 : vector<8x32xf32>
      %40 = arith.mulf %32, %32 : vector<8x32xf32>
      %41 = arith.mulf %39, %39 : vector<8x32xf32>
      %42 = arith.addf %40, %41 : vector<8x32xf32>
      %cst_26 = arith.constant 5.000000e-01 : f32
      %43 = vector.broadcast %cst_26 : f32 to vector<8x32xf32>
      %44 = arith.mulf %43, %36 : vector<8x32xf32>
      %45 = arith.mulf %44, %36 : vector<8x32xf32>
      %46 = arith.mulf %42, %45 : vector<8x32xf32>
      %47 = arith.addf %38, %46 : vector<8x32xf32>
      %cst_27 = arith.constant 5.000000e-01 : f32
      %48 = vector.broadcast %cst_27 : f32 to vector<8x32xf32>
      %49 = arith.subf %47, %48 : vector<8x32xf32>
      %cst_28 = arith.constant dense<0.000000e+00> : vector<8xf32>
      %50 = vector.multi_reduction <add>, %49, %cst_28 [1] : vector<8x32xf32> to vector<8xf32>
      %51 = vector.shape_cast %50 : vector<8xf32> to vector<8x1xf32>
      %cst_29 = arith.constant 8.000000e+00 : f32
      %52 = vector.broadcast %cst_29 : f32 to vector<8x1xf32>
      %53 = arith.divf %51, %52 : vector<8x1xf32>
      %54 = arith.addf %30, %53 : vector<8x1xf32>
      %55 = vector.shape_cast %54 : vector<8x1xf32> to vector<1x8x1xf32>
      %cst_30 = arith.constant dense<0xFF800000> : vector<1xf32>
      %56 = vector.multi_reduction <maximumf>, %55, %cst_30 [1, 2] : vector<1x8x1xf32> to vector<1xf32>
      %57 = vector.shape_cast %56 : vector<1xf32> to vector<1x1x1xf32>
      %58 = vector.extract %57[0, 0, 0] : f32 from vector<1x1x1xf32>
      %59 = vector.broadcast %58 : f32 to vector<8x1xf32>
      %60 = arith.subf %54, %59 : vector<8x1xf32>
      %61 = math.exp %60 : vector<8x1xf32>
      %62 = vector.shape_cast %61 : vector<8x1xf32> to vector<1x8x1xf32>
      %cst_31 = arith.constant dense<0.000000e+00> : vector<1xf32>
      %63 = vector.multi_reduction <add>, %62, %cst_31 [1, 2] : vector<1x8x1xf32> to vector<1xf32>
      %64 = vector.shape_cast %63 : vector<1xf32> to vector<1x1x1xf32>
      %65 = vector.extract %64[0, 0, 0] : f32 from vector<1x1x1xf32>
      %66 = math.log %65 : f32
      %67 = arith.addf %58, %66 : f32
      %c0_32 = arith.constant 0 : index
      %68 = memref.load %arg8[%c0_32] : memref<1xf32, #tpu.memory_space<smem>>
      memref.store %67, %arg8[%c0_32] : memref<1xf32, #tpu.memory_space<smem>>
      %69 = vector.shape_cast %30 : vector<8x1xf32> to vector<1x8x1xf32>
      %cst_33 = arith.constant dense<0.000000e+00> : vector<1xf32>
      %70 = vector.multi_reduction <add>, %69, %cst_33 [1, 2] : vector<1x8x1xf32> to vector<1xf32>
      %71 = vector.shape_cast %70 : vector<1xf32> to vector<1x1x1xf32>
      %72 = vector.extract %71[0, 0, 0] : f32 from vector<1x1x1xf32>
      %cst_34 = arith.constant 8.000000e+00 : f32
      %73 = arith.divf %72, %cst_34 : f32
      %c0_35 = arith.constant 0 : index
      %74 = memref.load %arg9[%c0_35] : memref<1xf32, #tpu.memory_space<smem>>
      memref.store %73, %arg9[%c0_35] : memref<1xf32, #tpu.memory_space<smem>>
      %75 = vector.shape_cast %53 : vector<8x1xf32> to vector<1x8x1xf32>
      %cst_36 = arith.constant dense<0.000000e+00> : vector<1xf32>
      %76 = vector.multi_reduction <add>, %75, %cst_36 [1, 2] : vector<1x8x1xf32> to vector<1xf32>
      %77 = vector.shape_cast %76 : vector<1xf32> to vector<1x1x1xf32>
      %78 = vector.extract %77[0, 0, 0] : f32 from vector<1x1x1xf32>
      %cst_37 = arith.constant 8.000000e+00 : f32
      %79 = arith.divf %78, %cst_37 : f32
      %c0_38 = arith.constant 0 : index
      %80 = memref.load %arg10[%c0_38] : memref<1xf32, #tpu.memory_space<smem>>
      memref.store %79, %arg10[%c0_38] : memref<1xf32, #tpu.memory_space<smem>>
    } else {
    }
    return
  }
  func.func @transform_0(%arg0: i32) -> (i32, i32) {
    %c0_i32 = arith.constant 0 : i32
    %c0_i32_0 = arith.constant 0 : i32
    return %c0_i32, %arg0 : i32, i32
  }
  func.func @transform_1(%arg0: i32) -> (i32, i32) {
    %c0_i32 = arith.constant 0 : i32
    %c0_i32_0 = arith.constant 0 : i32
    return %c0_i32, %arg0 : i32, i32
  }
  func.func @transform_2(%arg0: i32) -> (i32, i32) {
    %c0_i32 = arith.constant 0 : i32
    %c0_i32_0 = arith.constant 0 : i32
    return %c0_i32, %arg0 : i32, i32
  }
  func.func @transform_3(%arg0: i32) -> (i32, i32) {
    %c0_i32 = arith.constant 0 : i32
    %c0_i32_0 = arith.constant 0 : i32
    %c0_i32_1 = arith.constant 0 : i32
    return %c0_i32, %c0_i32_0 : i32, i32
  }
  func.func @transform_4(%arg0: i32) -> (i32, i32) {
    %c0_i32 = arith.constant 0 : i32
    %c0_i32_0 = arith.constant 0 : i32
    %c0_i32_1 = arith.constant 0 : i32
    return %c0_i32, %c0_i32_0 : i32, i32
  }
  func.func @transform_5(%arg0: i32) -> (i32, i32) {
    %c0_i32 = arith.constant 0 : i32
    %c0_i32_0 = arith.constant 0 : i32
    %c0_i32_1 = arith.constant 0 : i32
    return %c0_i32, %c0_i32_0 : i32, i32
  }
  func.func @transform_6(%arg0: i32) -> (i32, i32) {
    %c0_i32 = arith.constant 0 : i32
    %c0_i32_0 = arith.constant 0 : i32
    %c0_i32_1 = arith.constant 0 : i32
    return %c0_i32, %c0_i32_0 : i32, i32
  }
  func.func @transform_7(%arg0: i32) -> i32 {
    %c0_i32 = arith.constant 0 : i32
    %c0_i32_0 = arith.constant 0 : i32
    return %c0_i32 : i32
  }
  func.func @transform_8(%arg0: i32) -> i32 {
    %c0_i32 = arith.constant 0 : i32
    %c0_i32_0 = arith.constant 0 : i32
    return %c0_i32 : i32
  }
  func.func @transform_9(%arg0: i32) -> i32 {
    %c0_i32 = arith.constant 0 : i32
    %c0_i32_0 = arith.constant 0 : i32
    return %c0_i32 : i32
  }
}

</mosaic_0001>

<llo_original>
// kernel: tpu_custom_call.1
$region0: #{tpu_custom_call.1}
  #allocation0 [shape = 'u32[]', space=smem, size = 0x4, offset = 0x4, fixed_abs, tag = 'smem constant byte address 0x4 - core index']
  #allocation1 [shape = 'u32[144,128]{1,0:T(1,128)}', space=vmem, size = 0x12000, scoped, tag = 'internal scratch']
  #allocation2 [shape = 'f32[8,256]{1,0:T(8,128)}', space=vmem, size = 0x2000, scoped, tag = 'scratch operand']
  %s0 = inlined_call_operand.hbm [shape: f32[8,768], index: 0, kind: input, shape index: {}]
  %s1 = inlined_call_operand.hbm [shape: f32[8,768], index: 1, kind: input, shape index: {}]
  %s2 = inlined_call_operand.hbm [shape: f32[8,768], index: 2, kind: input, shape index: {}]
  %s3 = inlined_call_operand.hbm [shape: f32[8,32], index: 3, kind: input, shape index: {}]
  %s4 = inlined_call_operand.hbm [shape: f32[8,32], index: 4, kind: input, shape index: {}]
  %s5 = inlined_call_operand.vmem [shape: f32[8,32], index: 5, kind: input, shape index: {}]
  %s6 = inlined_call_operand.hbm [shape: f32[8,32], index: 6, kind: input, shape index: {}]
  %s7 = inlined_call_operand.hbm [shape: f32[1], index: 7, kind: output, shape index: {0}]
  %s8 = inlined_call_operand.hbm [shape: f32[1], index: 8, kind: output, shape index: {1}]
  %s9 = inlined_call_operand.hbm [shape: f32[1], index: 9, kind: output, shape index: {2}]
  %10 = xla_tuple %s7, %s8, %s9
  %s11 = sld [smem:[#allocation0]]
  $region109: #{tpu_custom_call.1} parent=0
    _
  %s13 = ssub.s32 1, %s11
  %s14 = scalar_select 0, %s13, %s11
  $region1: #{tpu_custom_call.1} parent=0
    #allocation3 [shape = 'u8[16384]{0}', space=vmem, size = 0x4000, scoped, tag = 'input window, operand 0']
    #allocation4 [shape = 's32[2]{0}', space=sflag, size = 0x8, scoped, tag = 'scoped memory for tpu_custom_call.1']
    #allocation5 [shape = 's32[2]{0}', space=sflag, size = 0x8, scoped, tag = 'scoped memory for tpu_custom_call.1']
    #allocation6 [shape = 'u8[16384]{0}', space=vmem, size = 0x4000, scoped, tag = 'input window, operand 1']
    #allocation7 [shape = 's32[2]{0}', space=sflag, size = 0x8, scoped, tag = 'scoped memory for tpu_custom_call.1']
    #allocation8 [shape = 'u8[16384]{0}', space=vmem, size = 0x4000, scoped, tag = 'input window, operand 2']
    #allocation9 [shape = 'u8[4096]{0}', space=vmem, size = 0x1000, scoped, tag = 'input window, operand 3, single buffered']
    #allocation10 [shape = 's32[1]{0}', space=sflag, size = 0x4, scoped, tag = 'scoped memory for tpu_custom_call.1']
    #allocation11 [shape = 'u8[4096]{0}', space=vmem, size = 0x1000, scoped, tag = 'input window, operand 4, single buffered']
    #allocation12 [shape = 'u8[4096]{0}', space=vmem, size = 0x1000, scoped, tag = 'input window, operand 6, single buffered']
    #allocation13 [shape = 's32[1]{0}', space=sflag, size = 0x4, scoped, tag = 'scoped memory for tpu_custom_call.1']
    #allocation14 [shape = 'u8[512]{0}', space=smem, size = 0x200, scoped, tag = 'output window, operand 0, single buffered']
    #allocation15 [shape = 'u8[512]{0}', space=smem, size = 0x200, scoped, tag = 'output window, operand 1, single buffered']
    #allocation16 [shape = 's32[1]{0}', space=sflag, size = 0x4, scoped, tag = 'scoped memory for tpu_custom_call.1']
    #allocation17 [shape = 'u8[512]{0}', space=smem, size = 0x200, scoped, tag = 'output window, operand 2, single buffered']
    %15 = vsyncpa [#allocation4], 0
    %s16 = scalar_lea.sflag [#allocation4], 1
    %17 = vsyncpa %s16, 0
    %18 = vsyncpa [#allocation7], 0
    %s19 = scalar_lea.sflag [#allocation7], 1
    %20 = vsyncpa %s19, 0
    %21 = vsyncpa [#allocation10], 0
    %22 = vsyncpa [#allocation13], 0
    %23 = vsyncpa [#allocation5], 0
    %24 = vsyncpa [#allocation16], 0
    loop: start=0, step=1, limit=5
    $region2: #{tpu_custom_call.1} parent=1 // loop_pre_header
      _
    $region3: #{tpu_custom_call.1} parent=1 // loop_header
      %s26 = sphi 0, %s30
      %p27 = scmp.ge.s32.totalorder %s26, 5
      %s36 = sphi 0, %s38
      %s39 = sphi 0, %s36
      %s40 = sphi 0, %s39
      %s56 = sphi 0, %s40
      %s62 = sphi 0, %s64
      %s65 = sphi 0, %s62
      %s66 = sphi 0, %s65
      %s82 = sphi 0, %s66
      %s88 = sphi 0, %s90
      %s91 = sphi 0, %s88
      %s92 = sphi 0, %s91
      %s108 = sphi 0, %s92
      %s112 = sphi 0, %s112
      %s114 = sphi 0, %s112
      %s115 = sphi 0, %s114
      %s129 = sphi 0, %s115
      %s133 = sphi 0, %s133
      %s135 = sphi 0, %s133
      %s136 = sphi 0, %s135
      %s150 = sphi 0, %s136
      %s154 = sphi 0, %s154
      %s156 = sphi 0, %s154
      %s157 = sphi 0, %s156
      %s171 = sphi 0, %s157
      %s175 = sphi 0, %s175
      %s177 = sphi 0, %s175
      %s178 = sphi 0, %s177
      %s192 = sphi 0, %s178
      %s196 = sphi 0, %s196
      %s198 = sphi 0, %s196
      %s199 = sphi 0, %s198
      %s213 = sphi 0, %s199
      %s217 = sphi 0, %s217
      %s219 = sphi 0, %s217
      %s220 = sphi 0, %s219
      %s234 = sphi 0, %s220
      %s238 = sphi 0, %s238
      %s240 = sphi 0, %s238
      %s241 = sphi 0, %s240
      %s255 = sphi 0, %s241
    $region4: #{tpu_custom_call.1} parent=1 // loop_header_branch
      %29 = sbr.rel (%p27) target = $region8
    $region5: #{tpu_custom_call.1} parent=1 // loop_body
      %s31 = ssub.s32 %s26, 1
      %s32 = ssub.s32 %s26, 2
      %s33 = sadd.s32 %s26, 1
      %s34 = ssub.s32 %s26, %s33
      %p35 = scmp.eq.s32.totalorder %s34, 0
      %s37 = sadd.s32 %s36, 1
      %s38 = scalar_select %p35, %s36, %s37
      %p41 = pneg %p35
      %p42 = scmp.eq.s32.totalorder %s26, 2
      %p43 = por %p41, %p42
      %p44 = scmp.ne.s32.totalorder %s36, %s39
      %p45 = scmp.eq.s32.totalorder %s26, 0
      %p46 = por %p44, %p45
      %p47 = scmp.ne.s32.totalorder %s36, %s39
      %p48 = scmp.eq.s32.totalorder %s31, 2
      %p49 = por %p47, %p48
      %p50 = scmp.ne.s32.totalorder %s39, %s40
      %p51 = scmp.eq.s32.totalorder %s31, 0
      %p52 = por %p50, %p51
      %p53 = scmp.ne.s32.totalorder %s39, %s40
      %p54 = scmp.eq.s32.totalorder %s32, 2
      %p55 = por %p53, %p54
      %p57 = scmp.ne.s32.totalorder %s40, %s56
      %p58 = scmp.eq.s32.totalorder %s32, 0
      %p59 = por %p57, %p58
      %s60 = ssub.s32 %s26, %s33
      %p61 = scmp.eq.s32.totalorder %s60, 0
      %s63 = sadd.s32 %s62, 1
      %s64 = scalar_select %p61, %s62, %s63
      %p67 = pneg %p61
      %p68 = scmp.eq.s32.totalorder %s26, 2
      %p69 = por %p67, %p68
      %p70 = scmp.ne.s32.totalorder %s62, %s65
      %p71 = scmp.eq.s32.totalorder %s26, 0
      %p72 = por %p70, %p71
      %p73 = scmp.ne.s32.totalorder %s62, %s65
      %p74 = scmp.eq.s32.totalorder %s31, 2
      %p75 = por %p73, %p74
      %p76 = scmp.ne.s32.totalorder %s65, %s66
      %p77 = scmp.eq.s32.totalorder %s31, 0
      %p78 = por %p76, %p77
      %p79 = scmp.ne.s32.totalorder %s65, %s66
      %p80 = scmp.eq.s32.totalorder %s32, 2
      %p81 = por %p79, %p80
      %p83 = scmp.ne.s32.totalorder %s66, %s82
      %p84 = scmp.eq.s32.totalorder %s32, 0
      %p85 = por %p83, %p84
      %s86 = ssub.s32 %s26, %s33
      %p87 = scmp.eq.s32.totalorder %s86, 0
      %s89 = sadd.s32 %s88, 1
      %s90 = scalar_select %p87, %s88, %s89
      %p93 = pneg %p87
      %p94 = scmp.eq.s32.totalorder %s26, 2
      %p95 = por %p93, %p94
      %p96 = scmp.ne.s32.totalorder %s88, %s91
      %p97 = scmp.eq.s32.totalorder %s26, 0
      %p98 = por %p96, %p97
      %p99 = scmp.ne.s32.totalorder %s88, %s91
      %p100 = scmp.eq.s32.totalorder %s31, 2
      %p101 = por %p99, %p100
      %p102 = scmp.ne.s32.totalorder %s91, %s92
      %p103 = scmp.eq.s32.totalorder %s31, 0
      %p104 = por %p102, %p103
      %p105 = scmp.ne.s32.totalorder %s91, %s92
      %p106 = scmp.eq.s32.totalorder %s32, 2
      %p107 = por %p105, %p106
      %p109 = scmp.ne.s32.totalorder %s92, %s108
      %p110 = scmp.eq.s32.totalorder %s32, 0
      %p111 = por %p109, %p110
      %s113 = sadd.s32 %s112, 1
      %p116 = scmp.eq.s32.totalorder %s26, 2
      %p117 = scmp.ne.s32.totalorder %s112, %s114
      %p118 = scmp.eq.s32.totalorder %s26, 0
      %p119 = por %p117, %p118
      %p120 = scmp.ne.s32.totalorder %s112, %s114
      %p121 = scmp.eq.s32.totalorder %s31, 2
      %p122 = por %p120, %p121
      %p123 = scmp.ne.s32.totalorder %s114, %s115
      %p124 = scmp.eq.s32.totalorder %s31, 0
      %p125 = por %p123, %p124
      %p126 = scmp.ne.s32.totalorder %s114, %s115
      %p127 = scmp.eq.s32.totalorder %s32, 2
      %p128 = por %p126, %p127
      %p130 = scmp.ne.s32.totalorder %s115, %s129
      %p131 = scmp.eq.s32.totalorder %s32, 0
      %p132 = por %p130, %p131
      %s134 = sadd.s32 %s133, 1
      %p137 = scmp.eq.s32.totalorder %s26, 2
      %p138 = scmp.ne.s32.totalorder %s133, %s135
      %p139 = scmp.eq.s32.totalorder %s26, 0
      %p140 = por %p138, %p139
      %p141 = scmp.ne.s32.totalorder %s133, %s135
      %p142 = scmp.eq.s32.totalorder %s31, 2
      %p143 = por %p141, %p142
      %p144 = scmp.ne.s32.totalorder %s135, %s136
      %p145 = scmp.eq.s32.totalorder %s31, 0
      %p146 = por %p144, %p145
      %p147 = scmp.ne.s32.totalorder %s135, %s136
      %p148 = scmp.eq.s32.totalorder %s32, 2
      %p149 = por %p147, %p148
      %p151 = scmp.ne.s32.totalorder %s136, %s150
      %p152 = scmp.eq.s32.totalorder %s32, 0
      %p153 = por %p151, %p152
      %s155 = sadd.s32 %s154, 1
      %p158 = scmp.eq.s32.totalorder %s26, 2
      %p159 = scmp.ne.s32.totalorder %s154, %s156
      %p160 = scmp.eq.s32.totalorder %s26, 0
      %p161 = por %p159, %p160
      %p162 = scmp.ne.s32.totalorder %s154, %s156
      %p163 = scmp.eq.s32.totalorder %s31, 2
      %p164 = por %p162, %p163
      %p165 = scmp.ne.s32.totalorder %s156, %s157
      %p166 = scmp.eq.s32.totalorder %s31, 0
      %p167 = por %p165, %p166
      %p168 = scmp.ne.s32.totalorder %s156, %s157
      %p169 = scmp.eq.s32.totalorder %s32, 2
      %p170 = por %p168, %p169
      %p172 = scmp.ne.s32.totalorder %s157, %s171
      %p173 = scmp.eq.s32.totalorder %s32, 0
      %p174 = por %p172, %p173
      %s176 = sadd.s32 %s175, 1
      %p179 = scmp.eq.s32.totalorder %s26, 2
      %p180 = scmp.ne.s32.totalorder %s175, %s177
      %p181 = scmp.eq.s32.totalorder %s26, 0
      %p182 = por %p180, %p181
      %p183 = scmp.ne.s32.totalorder %s175, %s177
      %p184 = scmp.eq.s32.totalorder %s31, 2
      %p185 = por %p183, %p184
      %p186 = scmp.ne.s32.totalorder %s177, %s178
      %p187 = scmp.eq.s32.totalorder %s31, 0
      %p188 = por %p186, %p187
      %p189 = scmp.ne.s32.totalorder %s177, %s178
      %p190 = scmp.eq.s32.totalorder %s32, 2
      %p191 = por %p189, %p190
      %p193 = scmp.ne.s32.totalorder %s178, %s192
      %p194 = scmp.eq.s32.totalorder %s32, 0
      %p195 = por %p193, %p194
      %s197 = sadd.s32 %s196, 1
      %p200 = scmp.eq.s32.totalorder %s26, 2
      %p201 = scmp.ne.s32.totalorder %s196, %s198
      %p202 = scmp.eq.s32.totalorder %s26, 0
      %p203 = por %p201, %p202
      %p204 = scmp.ne.s32.totalorder %s196, %s198
      %p205 = scmp.eq.s32.totalorder %s31, 2
      %p206 = por %p204, %p205
      %p207 = scmp.ne.s32.totalorder %s198, %s199
      %p208 = scmp.eq.s32.totalorder %s31, 0
      %p209 = por %p207, %p208
      %p210 = scmp.ne.s32.totalorder %s198, %s199
      %p211 = scmp.eq.s32.totalorder %s32, 2
      %p212 = por %p210, %p211
      %p214 = scmp.ne.s32.totalorder %s199, %s213
      %p215 = scmp.eq.s32.totalorder %s32, 0
      %p216 = por %p214, %p215
      %s218 = sadd.s32 %s217, 1
      %p221 = scmp.eq.s32.totalorder %s26, 2
      %p222 = scmp.ne.s32.totalorder %s217, %s219
      %p223 = scmp.eq.s32.totalorder %s26, 0
      %p224 = por %p222, %p223
      %p225 = scmp.ne.s32.totalorder %s217, %s219
      %p226 = scmp.eq.s32.totalorder %s31, 2
      %p227 = por %p225, %p226
      %p228 = scmp.ne.s32.totalorder %s219, %s220
      %p229 = scmp.eq.s32.totalorder %s31, 0
      %p230 = por %p228, %p229
      %p231 = scmp.ne.s32.totalorder %s219, %s220
      %p232 = scmp.eq.s32.totalorder %s32, 2
      %p233 = por %p231, %p232
      %p235 = scmp.ne.s32.totalorder %s220, %s234
      %p236 = scmp.eq.s32.totalorder %s32, 0
      %p237 = por %p235, %p236
      %s239 = sadd.s32 %s238, 1
      %p242 = scmp.eq.s32.totalorder %s26, 2
      %p243 = scmp.ne.s32.totalorder %s238, %s240
      %p244 = scmp.eq.s32.totalorder %s26, 0
      %p245 = por %p243, %p244
      %p246 = scmp.ne.s32.totalorder %s238, %s240
      %p247 = scmp.eq.s32.totalorder %s31, 2
      %p248 = por %p246, %p247
      %p249 = scmp.ne.s32.totalorder %s240, %s241
      %p250 = scmp.eq.s32.totalorder %s31, 0
      %p251 = por %p249, %p250
      %p252 = scmp.ne.s32.totalorder %s240, %s241
      %p253 = scmp.eq.s32.totalorder %s32, 2
      %p254 = por %p252, %p253
      %p256 = scmp.ne.s32.totalorder %s241, %s255
      %p257 = scmp.eq.s32.totalorder %s32, 0
      %p258 = por %p256, %p257
      %p259 = scmp.le.s32.totalorder 1, %s26
      %p260 = scmp.lt.s32.totalorder %s26, 4
      %p261 = pnand %p259, %p260
      %p262 = pneg %p261
      // Predicated region
      $region9: #{tpu_custom_call.1} parent=5 // pred_check
        _
      $region10: #{tpu_custom_call.1} parent=5 // pred_check_branch
        %264 = sbr.rel (%p261) target = $region12
      $region11: #{tpu_custom_call.1} parent=5 // pred_region
        %s265 = ssub.s32 %s26, 1
        // Predicated region
        $region13: #{tpu_custom_call.1} parent=11 // pred_check
          %p266 = pneg %p125
        $region14: #{tpu_custom_call.1} parent=11 // pred_check_branch
          %268 = sbr.rel (%p266) target = $region16
        $region15: #{tpu_custom_call.1} parent=11 // pred_region
          %s270 = ssub.s32 128, 128
          %271 = vsyncadd [#allocation10], %s270
          %s273 = sshll.u32 [#allocation9], 4
          %s274 = int_to_ptr.vmem [resolvable:$true] %s273
          %276 = dma.hbm_to_vmem [thread:$0]  %s3, 128, %s274, [#allocation10]
        $region16: #{tpu_custom_call.1} parent=11 // pred_fallthru
          _
        // Predicated region
        $region17: #{tpu_custom_call.1} parent=11 // pred_check
          %p277 = pneg %p146
        $region18: #{tpu_custom_call.1} parent=11 // pred_check_branch
          %279 = sbr.rel (%p277) target = $region20
        $region19: #{tpu_custom_call.1} parent=11 // pred_region
          %s281 = ssub.s32 128, 128
          %282 = vsyncadd [#allocation10], %s281
          %s284 = sshll.u32 [#allocation11], 4
          %s285 = int_to_ptr.vmem [resolvable:$true] %s284
          %287 = dma.hbm_to_vmem [thread:$0]  %s4, 128, %s285, [#allocation10]
        $region20: #{tpu_custom_call.1} parent=11 // pred_fallthru
          _
        // Predicated region
        $region21: #{tpu_custom_call.1} parent=11 // pred_check
          %p288 = pneg %p167
        $region22: #{tpu_custom_call.1} parent=11 // pred_check_branch
          %290 = sbr.rel (%p288) target = $region24
        $region23: #{tpu_custom_call.1} parent=11 // pred_region
          _
        $region24: #{tpu_custom_call.1} parent=11 // pred_fallthru
          _
        // Predicated region
        $region25: #{tpu_custom_call.1} parent=11 // pred_check
          %p291 = pneg %p188
        $region26: #{tpu_custom_call.1} parent=11 // pred_check_branch
          %293 = sbr.rel (%p291) target = $region28
        $region27: #{tpu_custom_call.1} parent=11 // pred_region
          %s295 = ssub.s32 128, 128
          %296 = vsyncadd [#allocation13], %s295
          %s298 = sshll.u32 [#allocation12], 4
          %s299 = int_to_ptr.vmem [resolvable:$true] %s298
          %301 = dma.hbm_to_vmem [thread:$0]  %s6, 128, %s299, [#allocation13]
        $region28: #{tpu_custom_call.1} parent=11 // pred_fallthru
          _
      $region12: #{tpu_custom_call.1} parent=5 // pred_fallthru
        _
      %p302 = scmp.lt.s32.totalorder %s26, 3
      // Predicated region
      $region29: #{tpu_custom_call.1} parent=5 // pred_check
        %p303 = pneg %p302
      $region30: #{tpu_custom_call.1} parent=5 // pred_check_branch
        %305 = sbr.rel (%p303) target = $region32
      $region31: #{tpu_custom_call.1} parent=5 // pred_region
        // Predicated region
        $region33: #{tpu_custom_call.1} parent=31 // pred_check
          %p306 = pneg %p46
        $region34: #{tpu_custom_call.1} parent=31 // pred_check_branch
          %308 = sbr.rel (%p306) target = $region36
        $region35: #{tpu_custom_call.1} parent=31 // pred_region
          %s309 = sand.u32 %s36, 1
          %s310 = scalar_lea.sflag [#allocation4], %s309
          %s311 = sand.u32 %s36, 1
          %s312 = smul.addr %s311, 16
          %s313 = scalar_lea.vmem [#allocation3], %s312
          %s314 = smul.u32 2, %s26
          %s316 = ssub.s32 256, 256
          %317 = vsyncadd %s310, %s316
          %s318 = smul.addr %s314, 128
          %s319 = scalar_lea.hbm %s0, %s318
          %s321 = sshll.u32 %s313, 4
          %s322 = int_to_ptr.vmem [resolvable:$true] %s321
          %324 = dma.hbm_to_vmem [thread:$0]  %s319, 256, %s322, %s310
        $region36: #{tpu_custom_call.1} parent=31 // pred_fallthru
          _
        // Predicated region
        $region37: #{tpu_custom_call.1} parent=31 // pred_check
          %p325 = pneg %p72
        $region38: #{tpu_custom_call.1} parent=31 // pred_check_branch
          %327 = sbr.rel (%p325) target = $region40
        $region39: #{tpu_custom_call.1} parent=31 // pred_region
          %s328 = sand.u32 %s26, 1
          %s329 = scalar_lea.sflag [#allocation7], %s328
          %s330 = sand.u32 %s62, 1
          %s331 = smul.addr %s330, 16
          %s332 = scalar_lea.vmem [#allocation6], %s331
          %s333 = smul.u32 2, %s26
          %s335 = ssub.s32 256, 256
          %336 = vsyncadd %s329, %s335
          %s337 = smul.addr %s333, 128
          %s338 = scalar_lea.hbm %s1, %s337
          %s340 = sshll.u32 %s332, 4
          %s341 = int_to_ptr.vmem [resolvable:$true] %s340
          %343 = dma.hbm_to_vmem [thread:$0]  %s338, 256, %s341, %s329
        $region40: #{tpu_custom_call.1} parent=31 // pred_fallthru
          _
        // Predicated region
        $region41: #{tpu_custom_call.1} parent=31 // pred_check
          %p344 = pneg %p98
        $region42: #{tpu_custom_call.1} parent=31 // pred_check_branch
          %346 = sbr.rel (%p344) target = $region44
        $region43: #{tpu_custom_call.1} parent=31 // pred_region
          %s347 = sand.u32 %s26, 1
          %s348 = scalar_lea.sflag [#allocation7], %s347
          %s349 = sand.u32 %s88, 1
          %s350 = smul.addr %s349, 16
          %s351 = scalar_lea.vmem [#allocation8], %s350
          %s352 = smul.u32 2, %s26
          %s354 = ssub.s32 256, 256
          %355 = vsyncadd %s348, %s354
          %s356 = smul.addr %s352, 128
          %s357 = scalar_lea.hbm %s2, %s356
          %s359 = sshll.u32 %s351, 4
          %s360 = int_to_ptr.vmem [resolvable:$true] %s359
          %362 = dma.hbm_to_vmem [thread:$0]  %s357, 256, %s360, %s348
        $region44: #{tpu_custom_call.1} parent=31 // pred_fallthru
          _
      $region32: #{tpu_custom_call.1} parent=5 // pred_fallthru
        _
      %p363 = scmp.le.s32.totalorder 1, %s26
      %p364 = scmp.lt.s32.totalorder %s26, 4
      %p365 = pnand %p363, %p364
      %p366 = pneg %p365
      // Predicated region
      $region45: #{tpu_custom_call.1} parent=5 // pred_check
        _
      $region46: #{tpu_custom_call.1} parent=5 // pred_check_branch
        %368 = sbr.rel (%p365) target = $region48
      $region47: #{tpu_custom_call.1} parent=5 // pred_region
        %s369 = ssub.s32 %s26, 1
        %s370 = sand.u32 %s39, 1
        %s371 = scalar_lea.sflag [#allocation4], %s370
        %s372 = sand.u32 %s39, 1
        %s373 = smul.addr %s372, 16
        %s374 = scalar_lea.vmem [#allocation3], %s373
        // Predicated region
        $region49: #{tpu_custom_call.1} parent=47 // pred_check
          %p375 = pneg %p52
        $region50: #{tpu_custom_call.1} parent=47 // pred_check_branch
          %377 = sbr.rel (%p375) target = $region52
        $region51: #{tpu_custom_call.1} parent=47 // pred_region
          %378 = dma.done %s371, 256
        $region52: #{tpu_custom_call.1} parent=47 // pred_fallthru
          _
        %s379 = sand.u32 %s31, 1
        %s380 = scalar_lea.sflag [#allocation7], %s379
        %s381 = sand.u32 %s65, 1
        %s382 = smul.addr %s381, 16
        %s383 = scalar_lea.vmem [#allocation6], %s382
        // Predicated region
        $region53: #{tpu_custom_call.1} parent=47 // pred_check
          %p384 = pneg %p78
        $region54: #{tpu_custom_call.1} parent=47 // pred_check_branch
          %386 = sbr.rel (%p384) target = $region56
        $region55: #{tpu_custom_call.1} parent=47 // pred_region
          %387 = dma.done %s380, 256
        $region56: #{tpu_custom_call.1} parent=47 // pred_fallthru
          _
        %s388 = sand.u32 %s31, 1
        %s389 = scalar_lea.sflag [#allocation7], %s388
        %s390 = sand.u32 %s91, 1
        %s391 = smul.addr %s390, 16
        %s392 = scalar_lea.vmem [#allocation8], %s391
        // Predicated region
        $region57: #{tpu_custom_call.1} parent=47 // pred_check
          %p393 = pneg %p104
        $region58: #{tpu_custom_call.1} parent=47 // pred_check_branch
          %395 = sbr.rel (%p393) target = $region60
        $region59: #{tpu_custom_call.1} parent=47 // pred_region
          %396 = dma.done %s389, 256
        $region60: #{tpu_custom_call.1} parent=47 // pred_fallthru
          _
        // Predicated region
        $region61: #{tpu_custom_call.1} parent=47 // pred_check
          %p397 = pneg %p125
        $region62: #{tpu_custom_call.1} parent=47 // pred_check_branch
          %399 = sbr.rel (%p397) target = $region64
        $region63: #{tpu_custom_call.1} parent=47 // pred_region
          %400 = dma.done [#allocation10], 128
        $region64: #{tpu_custom_call.1} parent=47 // pred_fallthru
          _
        // Predicated region
        $region65: #{tpu_custom_call.1} parent=47 // pred_check
          %p401 = pneg %p146
        $region66: #{tpu_custom_call.1} parent=47 // pred_check_branch
          %403 = sbr.rel (%p401) target = $region68
        $region67: #{tpu_custom_call.1} parent=47 // pred_region
          %404 = dma.done [#allocation10], 128
        $region68: #{tpu_custom_call.1} parent=47 // pred_fallthru
          _
        // Predicated region
        $region69: #{tpu_custom_call.1} parent=47 // pred_check
          %p405 = pneg %p188
        $region70: #{tpu_custom_call.1} parent=47 // pred_check_branch
          %407 = sbr.rel (%p405) target = $region72
        $region71: #{tpu_custom_call.1} parent=47 // pred_region
          %408 = dma.done [#allocation13], 128
        $region72: #{tpu_custom_call.1} parent=47 // pred_fallthru
          _
        %s409 = sand.u32 %s39, 1
        %s410 = scalar_lea.sflag [#allocation4], %s409
        %s411 = sand.u32 %s39, 1
        %s412 = smul.addr %s411, 16
        %s413 = scalar_lea.vmem [#allocation3], %s412
        %p414 = pneg %p52
        %p415 = pneg %p49
        %s416 = sand.u32 %s31, 1
        %s417 = scalar_lea.sflag [#allocation7], %s416
        %s418 = sand.u32 %s65, 1
        %s419 = smul.addr %s418, 16
        %s420 = scalar_lea.vmem [#allocation6], %s419
        %p421 = pneg %p78
        %p422 = pneg %p75
        %s423 = sand.u32 %s31, 1
        %s424 = scalar_lea.sflag [#allocation7], %s423
        %s425 = sand.u32 %s91, 1
        %s426 = smul.addr %s425, 16
        %s427 = scalar_lea.vmem [#allocation8], %s426
        %p428 = pneg %p104
        %p429 = pneg %p101
        %p430 = pneg %p125
        %p431 = pneg %p122
        %p432 = pneg %p146
        %p433 = pneg %p143
        %p434 = pneg %p167
        %p435 = pneg %p164
        %p436 = pneg %p188
        %p437 = pneg %p185
        %p438 = pneg %p209
        %p439 = pneg %p206
        %p440 = pneg %p230
        %p441 = pneg %p227
        %p442 = pneg %p251
        %p443 = pneg %p248
        %s444 = smul.u32 2, %s31
        %s445 = smul.u32 2, %s31
        %s446 = smul.u32 2, %s31
        %p447 = scmp.eq.s32.totalorder %s31, 0
        // Predicated region
        $region73: #{tpu_custom_call.1} parent=47 // pred_check
          %p448 = pneg %p447
        $region74: #{tpu_custom_call.1} parent=47 // pred_check_branch
          %450 = sbr.rel (%p448) target = $region76
        $region75: #{tpu_custom_call.1} parent=47 // pred_region
          %451 = vst [vmem:[#allocation2] sm:$0xff] 0.0
          %452 = vst [vmem:[#allocation2 + $0x8] sm:$0xff] 0.0
        $region76: #{tpu_custom_call.1} parent=47 // pred_fallthru
          _
        %v453 = vld [vmem:[%s374] sm:$0xff]
        %v454 = vld [vmem:[%s374 + $0x8] sm:$0xff]
        %v455 = vld [vmem:[%s383] sm:$0xff]
        %v456 = vld [vmem:[%s383 + $0x8] sm:$0xff]
        %v457 = vld [vmem:[%s392] sm:$0xff]
        %v458 = vld [vmem:[%s392 + $0x8] sm:$0xff]
        %v459 = vrcp.pop %v455
        %v460 = vrcp.pop %v456
        %v461 = vsub.f32 %v457, %v453
        %v462 = vsub.f32 %v458, %v454
        %v463 = vmul.f32 %v461, %v459
        %v464 = vmul.f32 %v462, %v460
        %v465 = vld [vmem:[#allocation2] sm:$0xff]
        %v466 = vld [vmem:[#allocation2 + $0x8] sm:$0xff]
        %v467 = vmul.f32 %v463, %v463
        %v468 = vmul.f32 %v464, %v464
        %v469 = vmul.f32 %v467, -0.5
        %v470 = vmul.f32 %v468, -0.5
        %v471 = vlog2.pop %v459
        %v472 = vmul.f32 %v471, 0.6931472
        %v473 = vlog2.pop %v460
        %v474 = vmul.f32 %v473, 0.6931472
        %v475 = vadd.f32 %v469, %v472
        %v476 = vadd.f32 %v470, %v474
        %v477 = vsub.f32 %v475, 0.9189385
        %v478 = vsub.f32 %v476, 0.9189385
        %v479 = vadd.f32 %v465, %v477
        %v480 = vadd.f32 %v466, %v478
        %481 = vst [vmem:[#allocation2] sm:$0xff] %v479
        %482 = vst [vmem:[#allocation2 + $0x8] sm:$0xff] %v480
        %p483 = scmp.eq.s32.totalorder %s31, 2
        // Predicated region
        $region77: #{tpu_custom_call.1} parent=47 // pred_check
          %p484 = pneg %p483
        $region78: #{tpu_custom_call.1} parent=47 // pred_check_branch
          %486 = sbr.rel (%p484) target = $region80
        $region79: #{tpu_custom_call.1} parent=47 // pred_region
          %v487 = vld [vmem:[#allocation2] sm:$0xff]
          %v488 = vld [vmem:[#allocation2 + $0x8] sm:$0xff]
          %v489 = vadd.f32 %v487, %v488
          %490 = vadd.xlane.f32.xlu0 %v489
          %v491 = vpop.xlane.xlu0 %490
          %v492 = vadd.f32 %v491, 88.2181
          %v493 = vsub.f32 0.0, %v492
          %v494 = vrcp.pop 4.0
          %v495 = vmul.f32 %v493, %v494
          %v496 = vld [vmem:[#allocation9] sm:$0xff]
          %v497 = vld [vmem:[#allocation11] sm:$0xff]
          %v498 = vld [vmem:[%s5] sm:$0xff]
          %v499 = vld [vmem:[#allocation12] sm:$0xff]
          %v500 = vrcp.pop %v497
          %v501 = vrcp.pop %v499
          %v502 = vmul.f32 %v499, %v500
          %v503 = vlog2.pop %v502
          %v504 = vmul.f32 %v503, 0.6931472
          %v505 = vsub.f32 %v496, %v498
          %v506 = vmul.f32 %v497, %v497
          %v507 = vmul.f32 %v505, %v505
          %v508 = vadd.f32 %v506, %v507
          %v509 = vmul.f32 %v501, 0.5
          %v510 = vmul.f32 %v509, %v501
          %v511 = vmul.f32 %v508, %v510
          %v512 = vadd.f32 %v504, %v511
          %v513 = vsub.f32 %v512, 0.5
          %vm514 = vcmask 261120
          %v515 = vsel %vm514, %v513, 0.0
          %516 = vadd.xlane.f32.xlu0 %v515
          %v517 = vpop.xlane.xlu0 %516
          %v518 = vrcp.pop 8.0
          %v519 = vmul.f32 %v517, %v518
          %v520 = vadd.f32 %v495, %v519
          %v521 = vrot.slane %v520, 4
          %v522 = vmax.f32 %v520, %v521
          %v523 = vrot.slane %v522, 2
          %v524 = vmax.f32 %v522, %v523
          %v525 = vrot.slane %v524, 1
          %v526 = vmax.f32 %v524, %v525
          %s527 = vtos %v526
          %v528 = vstv %s527
          %v529 = vsub.f32 %v520, %v528
          %v530 = vmul.f32 %v529, 1.442695
          %v531 = vpow.pop %v530
          %vm532 = vcmask 7168
          %v533 = vsel %vm532, %v531, 0.0
          %534 = vadd.xlane.f32.xlu0 %v533
          %v535 = vpop.xlane.xlu0 %534
          %v536 = vrot.slane %v535, 4
          %v537 = vadd.f32 %v535, %v536
          %v538 = vrot.slane %v537, 2
          %v539 = vadd.f32 %v537, %v538
          %v540 = vrot.slane %v539, 1
          %v541 = vadd.f32 %v539, %v540
          %s542 = vtos %v541
          %v543 = vstv %s542
          %v544 = vlog2.pop %v543
          %v545 = vmul.f32 %v544, 0.6931472
          %s546 = vtos %v545
          %s547 = sadd.f32 %s527, %s546
          %s548 = scalar_lea.smem [#allocation14], 0
          %549 = sst [smem:[%s548]] %s547
          %v550 = vsel %vm532, %v495, 0.0
          %551 = vadd.xlane.f32.xlu0 %v550
          %v552 = vpop.xlane.xlu0 %551
          %v553 = vrot.slane %v552, 4
          %v554 = vadd.f32 %v552, %v553
          %v555 = vrot.slane %v554, 2
          %v556 = vadd.f32 %v554, %v555
          %v557 = vrot.slane %v556, 1
          %v558 = vadd.f32 %v556, %v557
          %s559 = vtos %v558
          %v560 = vrcp.pop 8.0
          %s561 = vtos %v560
          %s562 = smul.f32 %s559, %s561
          %s563 = scalar_lea.smem [#allocation15], 0
          %564 = sst [smem:[%s563]] %s562
          %v565 = vsel %vm532, %v519, 0.0
          %566 = vadd.xlane.f32.xlu0 %v565
          %v567 = vpop.xlane.xlu0 %566
          %v568 = vrot.slane %v567, 4
          %v569 = vadd.f32 %v567, %v568
          %v570 = vrot.slane %v569, 2
          %v571 = vadd.f32 %v569, %v570
          %v572 = vrot.slane %v571, 1
          %v573 = vadd.f32 %v571, %v572
          %s574 = vtos %v573
          %v575 = vrcp.pop 8.0
          %s576 = vtos %v575
          %s577 = smul.f32 %s574, %s576
          %s578 = scalar_lea.smem [#allocation17], 0
          %579 = sst [smem:[%s578]] %s577
        $region80: #{tpu_custom_call.1} parent=47 // pred_fallthru
          _
        // Predicated region
        $region81: #{tpu_custom_call.1} parent=47 // pred_check
          %p580 = pneg %p206
        $region82: #{tpu_custom_call.1} parent=47 // pred_check_branch
          %582 = sbr.rel (%p580) target = $region84
        $region83: #{tpu_custom_call.1} parent=47 // pred_region
          %s584 = ssub.s32 16, 16
          %585 = vsyncadd [#allocation5], %s584
          %588 = dma.smem_to_hbm [#allocation14], 16, %s7, [#allocation5]
        $region84: #{tpu_custom_call.1} parent=47 // pred_fallthru
          _
        // Predicated region
        $region85: #{tpu_custom_call.1} parent=47 // pred_check
          %p589 = pneg %p227
        $region86: #{tpu_custom_call.1} parent=47 // pred_check_branch
          %591 = sbr.rel (%p589) target = $region88
        $region87: #{tpu_custom_call.1} parent=47 // pred_region
          %s593 = ssub.s32 16, 16
          %594 = vsyncadd [#allocation16], %s593
          %597 = dma.smem_to_hbm [#allocation15], 16, %s8, [#allocation16]
        $region88: #{tpu_custom_call.1} parent=47 // pred_fallthru
          _
        // Predicated region
        $region89: #{tpu_custom_call.1} parent=47 // pred_check
          %p598 = pneg %p248
        $region90: #{tpu_custom_call.1} parent=47 // pred_check_branch
          %600 = sbr.rel (%p598) target = $region92
        $region91: #{tpu_custom_call.1} parent=47 // pred_region
          %s602 = ssub.s32 16, 16
          %603 = vsyncadd [#allocation16], %s602
          %606 = dma.smem_to_hbm [#allocation17], 16, %s9, [#allocation16]
        $region92: #{tpu_custom_call.1} parent=47 // pred_fallthru
          _
        // Predicated region
        $region93: #{tpu_custom_call.1} parent=47 // pred_check
          %p607 = pneg %p206
        $region94: #{tpu_custom_call.1} parent=47 // pred_check_branch
          %609 = sbr.rel (%p607) target = $region96
        $region95: #{tpu_custom_call.1} parent=47 // pred_region
          %610 = dma.done [#allocation5], 16
        $region96: #{tpu_custom_call.1} parent=47 // pred_fallthru
          _
        // Predicated region
        $region97: #{tpu_custom_call.1} parent=47 // pred_check
          %p611 = pneg %p227
        $region98: #{tpu_custom_call.1} parent=47 // pred_check_branch
          %613 = sbr.rel (%p611) target = $region100
        $region99: #{tpu_custom_call.1} parent=47 // pred_region
          %614 = dma.done [#allocation16], 16
        $region100: #{tpu_custom_call.1} parent=47 // pred_fallthru
          _
        // Predicated region
        $region101: #{tpu_custom_call.1} parent=47 // pred_check
          %p615 = pneg %p248
        $region102: #{tpu_custom_call.1} parent=47 // pred_check_branch
          %617 = sbr.rel (%p615) target = $region104
        $region103: #{tpu_custom_call.1} parent=47 // pred_region
          %618 = dma.done [#allocation16], 16
        $region104: #{tpu_custom_call.1} parent=47 // pred_fallthru
          _
        %619 = sfence
      $region48: #{tpu_custom_call.1} parent=5 // pred_fallthru
        _
      %p620 = scmp.le.s32.totalorder 2, %s26
      // Predicated region
      $region105: #{tpu_custom_call.1} parent=5 // pred_check
        %p621 = pneg %p620
      $region106: #{tpu_custom_call.1} parent=5 // pred_check_branch
        %623 = sbr.rel (%p621) target = $region108
      $region107: #{tpu_custom_call.1} parent=5 // pred_region
        %s624 = ssub.s32 %s26, 2
      $region108: #{tpu_custom_call.1} parent=5 // pred_fallthru
        _
    $region6: #{tpu_custom_call.1} parent=1 // loop_footer
      %s30 = sadd.s32 1, %s26
    $region7: #{tpu_custom_call.1} parent=1 // loop_footer_branch
      %25 = sbr.rel target = $region3
    $region8: #{tpu_custom_call.1} parent=1 // loop_exit
      _
    %625 = vsyncpa [#allocation4], 1
    %s626 = scalar_lea.sflag [#allocation4], 1
    %627 = vsyncpa %s626, 1
    %628 = vsyncpa [#allocation7], 1
    %s629 = scalar_lea.sflag [#allocation7], 1
    %630 = vsyncpa %s629, 1
    %631 = vsyncpa [#allocation10], 1
    %632 = vsyncpa [#allocation13], 1
    %633 = vsyncpa [#allocation5], 1
    %s634 = scalar_lea.sflag [#allocation5], 1
    %635 = vsyncpa %s634, 1
    %636 = vsyncpa [#allocation16], 1

</llo_original>
